<compile_context>
chip_gen: v5e
topology: v5e:2x2
jax: 0.10.0
libtpu: 0.0.40
codegen_flags: <defaults>
</compile_context>

<pallas_src>
import jax
import jax.numpy as jnp
from jax.experimental import pallas as pl
from jax.experimental.pallas import tpu as pltpu

SIGMA_DATA = 0.5
SIGMA_MIN = 0.002
SIGMA_MAX = 80.0
RHO = 7.0


def _edm_kernel(coef_ref, x_ref, w_ref, bias_ref, emb_ref, o_ref):
    # coef_ref: (4, B)  f32 in SMEM: rows = [c_in, c_skip, c_out, c_noise]
    # x_ref:    (C, TILE_HW) input block for one batch element (lane-dense)
    # w_ref:    (C, C)   1x1-conv weight (channel mixing), VMEM-resident
    # bias_ref: (C, 1)
    # emb_ref:  (C, 1)   noise-embedding direction
    b = pl.program_id(0)
    c_in = coef_ref[0, b]
    c_skip = coef_ref[1, b]
    c_out = coef_ref[2, b]
    c_noise = coef_ref[3, b]

    x = x_ref[...]                       # (C, TILE_HW) f32
    x_in = x * c_in                      # scalar * tensor (VPU)

    C = x.shape[0]
    w = w_ref[...]                       # (C, C)
    if C <= 8:
        # Tiny channel mix: C broadcast-FMAs on the VPU.  A CxC contraction on
        # the MXU would be pure padding (K padded to 128/256) for zero benefit.
        h = w[:, 0:1] * x_in[0:1, :]
        for c in range(1, C):
            h = h + w[:, c:c + 1] * x_in[c:c + 1, :]
    else:
        h = jnp.dot(w, x_in, preferred_element_type=jnp.float32)

    # bias + emb * c_noise is a single per-batch (C, 1) vector (lane broadcast).
    h = h + (bias_ref[...] + emb_ref[...] * c_noise)

    o_ref[...] = (c_skip * x + c_out * h).astype(o_ref.dtype)


def _pick_tile_hw(HW, C, itemsize, target_bytes=2 * 1024 * 1024):
    """Lane-dense HW tile: full row if it fits the ~2 MiB target, else the
    largest multiple of 128 columns under the target (partial last block is
    handled by pl.cdiv; out-of-range columns are masked on write)."""
    max_cols = max(128, (target_bytes // (C * itemsize)) // 128 * 128)
    return HW if HW <= max_cols else max_cols


def edm_precond_forward(X, sigma, W, bias, emb, cond=None):
    """X: [B, C, H, W] f32, sigma: [B] f32. Returns [B, C, H, W] f32."""
    # TODO(synk): `cond` is ignored (no defined semantics in the reference module).
    B, C, H, Wd = X.shape
    HW = H * Wd

    # Free (row-major) reshape: no HBM data movement.
    x3 = X.reshape(B, C, HW)

    # ---- EDM preconditioning coefficients: O(B) plain-XLA work ----
    sigma = jnp.where(sigma == 0.0, jnp.float32(SIGMA_MIN), sigma).astype(jnp.float32)
    sd2 = jnp.float32(SIGMA_DATA * SIGMA_DATA)
    denom = sigma * sigma + sd2
    inv = 1.0 / jnp.sqrt(denom)
    coefs = jnp.stack(
        [inv,                                   # c_in
         sd2 / denom,                           # c_skip
         sigma * jnp.float32(SIGMA_DATA) * inv,  # c_out
         jnp.log(sigma) / 4.0],                 # c_noise
        axis=0)                                 # (4, B): long axis last for SMEM

    itemsize = X.dtype.itemsize
    TILE_HW = _pick_tile_hw(HW, C, itemsize)
    grid = (B, pl.cdiv(HW, TILE_HW))

    # Size the VMEM budget from actual block bytes; stay well under v7x's
    # 64 MiB physical VMEM (double-buffered x + out blocks + headroom).
    block_bytes = C * TILE_HW * itemsize
    vmem_limit = int(min(48 * 1024 * 1024, max(16 * 1024 * 1024, 6 * block_bytes)))

    out3 = pl.pallas_call(
        _edm_kernel,
        out_shape=jax.ShapeDtypeStruct((B, C, HW), X.dtype),
        grid=grid,
        in_specs=[
            pl.BlockSpec(memory_space=pltpu.MemorySpace.SMEM),                  # coefs (4, B)
            pl.BlockSpec((pl.Squeezed(), C, TILE_HW), lambda b, j: (b, 0, j)),  # x block
            pl.BlockSpec((C, C), lambda b, j: (0, 0)),                          # W (resident)
            pl.BlockSpec((C, 1), lambda b, j: (0, 0)),                          # bias
            pl.BlockSpec((C, 1), lambda b, j: (0, 0)),                          # emb
        ],
        out_specs=pl.BlockSpec((pl.Squeezed(), C, TILE_HW), lambda b, j: (b, 0, j)),
        compiler_params=pltpu.CompilerParams(
            dimension_semantics=("parallel", "parallel"),
            vmem_limit_bytes=vmem_limit,
        ),
    )(coefs, x3, W, bias.reshape(C, 1), emb.reshape(C, 1))

    return out3.reshape(B, C, H, Wd)


def _reference_forward(X, sigma, W, bias, emb):
    sigma = jnp.where(sigma == 0.0, SIGMA_MIN, sigma)
    sv = sigma.reshape(-1, 1, 1, 1)
    c_skip = SIGMA_DATA ** 2 / (sv ** 2 + SIGMA_DATA ** 2)
    c_out = sv * SIGMA_DATA / jnp.sqrt(sv ** 2 + SIGMA_DATA ** 2)
    c_in = 1.0 / jnp.sqrt(SIGMA_DATA ** 2 + sv ** 2)
    c_noise = jnp.log(sigma) / 4.0
    x_in = c_in * X
    h = jnp.einsum("oc,bchw->bohw", W, x_in, precision=jax.lax.Precision.HIGHEST)
    h = h + bias.reshape(1, -1, 1, 1) + emb.reshape(1, -1, 1, 1) * c_noise.reshape(-1, 1, 1, 1)
    return c_skip * X + c_out * h


if __name__ == "__main__":
    B, C, H, Wd = 2, 4, 16, 16

    key = jax.random.PRNGKey(0)
    kx, ks, kw, kb, ke = jax.random.split(key, 5)

    X = jax.random.normal(kx, (B, C, H, Wd), dtype=jnp.float32)
    sigma = jax.random.uniform(ks, (B,), minval=0.0, maxval=10.0, dtype=jnp.float32)
    sigma = sigma.at[0].set(0.0)  # exercise the sigma == 0 -> sigma_min branch

    # deterministic synthetic inner-model parameters (1x1 conv + noise embedding)
    W = jax.random.normal(kw, (C, C), dtype=jnp.float32) * 0.1
    bias = jax.random.normal(kb, (C,), dtype=jnp.float32) * 0.01
    emb = jax.random.normal(ke, (C,), dtype=jnp.float32) * 0.01

    out = jax.block_until_ready(edm_precond_forward(X, sigma, W, bias, emb))

    ref = _reference_forward(X, sigma, W, bias, emb)
    assert out.shape == (B, C, H, Wd)
    assert jnp.allclose(out, ref, rtol=1e-4, atol=1e-5), "mismatch vs reference"

    print("KERNEL_OK")
</pallas_src>

<mosaic_0001>
module attributes {stable_mosaic.version = 11 : i64} {
  func.func @_edm_kernel(%arg0: i32, %arg1: i32, %arg2: memref<4x2xf32, #tpu.memory_space<smem>>, %arg3: memref<1x4x256xf32, #tpu.memory_space<vmem>>, %arg4: memref<4x4xf32, #tpu.memory_space<vmem>>, %arg5: memref<4x1xf32, #tpu.memory_space<vmem>>, %arg6: memref<4x1xf32, #tpu.memory_space<vmem>>, %arg7: memref<1x4x256xf32, #tpu.memory_space<vmem>>) attributes {dimension_semantics = [#tpu.dimension_semantics<parallel>, #tpu.dimension_semantics<parallel>], iteration_bounds = array<i64: 2, 1>, scalar_prefetch = 0 : i64, scratch_operands = 0 : i64, tpu.core_type = #tpu.core_type<tc>, window_params = [{transform_indices = @transform_0, window_bounds = array<i64: 4, 2>}, {transform_indices = @transform_1, window_bounds = array<i64: 1, 4, 256>}, {pipeline_mode = #tpu.pipeline_mode<synchronous>, transform_indices = @transform_2, window_bounds = array<i64: 4, 4>}, {pipeline_mode = #tpu.pipeline_mode<synchronous>, transform_indices = @transform_3, window_bounds = array<i64: 4, 1>}, {pipeline_mode = #tpu.pipeline_mode<synchronous>, transform_indices = @transform_4, window_bounds = array<i64: 4, 1>}, {transform_indices = @transform_5, window_bounds = array<i64: 1, 4, 256>}]} {
    %c0 = arith.constant 0 : index
    %0 = arith.index_cast %arg0 : i32 to index
    %1 = memref.load %arg2[%c0, %0] : memref<4x2xf32, #tpu.memory_space<smem>>
    %c1 = arith.constant 1 : index
    %2 = arith.index_cast %arg0 : i32 to index
    %3 = memref.load %arg2[%c1, %2] : memref<4x2xf32, #tpu.memory_space<smem>>
    %c2 = arith.constant 2 : index
    %4 = arith.index_cast %arg0 : i32 to index
    %5 = memref.load %arg2[%c2, %4] : memref<4x2xf32, #tpu.memory_space<smem>>
    %c3 = arith.constant 3 : index
    %6 = arith.index_cast %arg0 : i32 to index
    %7 = memref.load %arg2[%c3, %6] : memref<4x2xf32, #tpu.memory_space<smem>>
    %c0_0 = arith.constant 0 : index
    %c0_1 = arith.constant 0 : index
    %c0_2 = arith.constant 0 : index
    %8 = vector.load %arg3[%c0_0, %c0_1, %c0_2] : memref<1x4x256xf32, #tpu.memory_space<vmem>>, vector<1x4x256xf32>
    %9 = vector.shape_cast %8 : vector<1x4x256xf32> to vector<4x256xf32>
    %10 = vector.broadcast %1 : f32 to vector<4x256xf32>
    %11 = arith.mulf %9, %10 : vector<4x256xf32>
    %c0_3 = arith.constant 0 : index
    %c0_4 = arith.constant 0 : index
    %12 = vector.load %arg4[%c0_3, %c0_4] : memref<4x4xf32, #tpu.memory_space<vmem>>, vector<4x4xf32>
    %13 = vector.extract_strided_slice %12 {offsets = [0, 0], sizes = [4, 1], strides = [1, 1]} : vector<4x4xf32> to vector<4x1xf32>
    %14 = vector.extract_strided_slice %11 {offsets = [0, 0], sizes = [1, 256], strides = [1, 1]} : vector<4x256xf32> to vector<1x256xf32>
    %15 = vector.broadcast %13 : vector<4x1xf32> to vector<4x256xf32>
    %16 = vector.broadcast %14 : vector<1x256xf32> to vector<4x256xf32>
    %17 = arith.mulf %15, %16 : vector<4x256xf32>
    %18 = vector.extract_strided_slice %12 {offsets = [0, 1], sizes = [4, 1], strides = [1, 1]} : vector<4x4xf32> to vector<4x1xf32>
    %19 = vector.extract_strided_slice %11 {offsets = [1, 0], sizes = [1, 256], strides = [1, 1]} : vector<4x256xf32> to vector<1x256xf32>
    %20 = vector.broadcast %18 : vector<4x1xf32> to vector<4x256xf32>
    %21 = vector.broadcast %19 : vector<1x256xf32> to vector<4x256xf32>
    %22 = arith.mulf %20, %21 : vector<4x256xf32>
    %23 = arith.addf %17, %22 : vector<4x256xf32>
    %24 = vector.extract_strided_slice %12 {offsets = [0, 2], sizes = [4, 1], strides = [1, 1]} : vector<4x4xf32> to vector<4x1xf32>
    %25 = vector.extract_strided_slice %11 {offsets = [2, 0], sizes = [1, 256], strides = [1, 1]} : vector<4x256xf32> to vector<1x256xf32>
    %26 = vector.broadcast %24 : vector<4x1xf32> to vector<4x256xf32>
    %27 = vector.broadcast %25 : vector<1x256xf32> to vector<4x256xf32>
    %28 = arith.mulf %26, %27 : vector<4x256xf32>
    %29 = arith.addf %23, %28 : vector<4x256xf32>
    %30 = vector.extract_strided_slice %12 {offsets = [0, 3], sizes = [4, 1], strides = [1, 1]} : vector<4x4xf32> to vector<4x1xf32>
    %31 = vector.extract_strided_slice %11 {offsets = [3, 0], sizes = [1, 256], strides = [1, 1]} : vector<4x256xf32> to vector<1x256xf32>
    %32 = vector.broadcast %30 : vector<4x1xf32> to vector<4x256xf32>
    %33 = vector.broadcast %31 : vector<1x256xf32> to vector<4x256xf32>
    %34 = arith.mulf %32, %33 : vector<4x256xf32>
    %35 = arith.addf %29, %34 : vector<4x256xf32>
    %c0_5 = arith.constant 0 : index
    %c0_6 = arith.constant 0 : index
    %36 = vector.load %arg5[%c0_5, %c0_6] : memref<4x1xf32, #tpu.memory_space<vmem>>, vector<4x1xf32>
    %c0_7 = arith.constant 0 : index
    %c0_8 = arith.constant 0 : index
    %37 = vector.load %arg6[%c0_7, %c0_8] : memref<4x1xf32, #tpu.memory_space<vmem>>, vector<4x1xf32>
    %38 = vector.broadcast %7 : f32 to vector<4x1xf32>
    %39 = arith.mulf %37, %38 : vector<4x1xf32>
    %40 = arith.addf %36, %39 : vector<4x1xf32>
    %41 = vector.broadcast %40 : vector<4x1xf32> to vector<4x256xf32>
    %42 = arith.addf %35, %41 : vector<4x256xf32>
    %43 = vector.broadcast %3 : f32 to vector<4x256xf32>
    %44 = arith.mulf %43, %9 : vector<4x256xf32>
    %45 = vector.broadcast %5 : f32 to vector<4x256xf32>
    %46 = arith.mulf %45, %42 : vector<4x256xf32>
    %47 = arith.addf %44, %46 : vector<4x256xf32>
    %c0_9 = arith.constant 0 : index
    %c0_10 = arith.constant 0 : index
    %c0_11 = arith.constant 0 : index
    %48 = vector.load %arg7[%c0_9, %c0_10, %c0_11] : memref<1x4x256xf32, #tpu.memory_space<vmem>>, vector<1x4x256xf32>
    %49 = vector.shape_cast %48 : vector<1x4x256xf32> to vector<4x256xf32>
    %50 = vector.shape_cast %47 : vector<4x256xf32> to vector<1x4x256xf32>
    tpu.vector_store %arg7[%c0_9, %c0_10, %c0_11], %50 {strides = array<i32>} : memref<1x4x256xf32, #tpu.memory_space<vmem>>, vector<1x4x256xf32>,
    return
  }
  func.func @transform_0(%arg0: i32, %arg1: i32) -> (i32, i32) {
    %c0_i32 = arith.constant 0 : i32
    %c0_i32_0 = arith.constant 0 : i32
    %c0_i32_1 = arith.constant 0 : i32
    return %c0_i32, %c0_i32_0 : i32, i32
  }
  func.func @transform_1(%arg0: i32, %arg1: i32) -> (i32, i32, i32) {
    %c0_i32 = arith.constant 0 : i32
    %c0_i32_0 = arith.constant 0 : i32
    return %arg0, %c0_i32, %arg1 : i32, i32, i32
  }
  func.func @transform_2(%arg0: i32, %arg1: i32) -> (i32, i32) {
    %c0_i32 = arith.constant 0 : i32
    %c0_i32_0 = arith.constant 0 : i32
    %c0_i32_1 = arith.constant 0 : i32
    return %c0_i32, %c0_i32_0 : i32, i32
  }
  func.func @transform_3(%arg0: i32, %arg1: i32) -> (i32, i32) {
    %c0_i32 = arith.constant 0 : i32
    %c0_i32_0 = arith.constant 0 : i32
    %c0_i32_1 = arith.constant 0 : i32
    return %c0_i32, %c0_i32_0 : i32, i32
  }
  func.func @transform_4(%arg0: i32, %arg1: i32) -> (i32, i32) {
    %c0_i32 = arith.constant 0 : i32
    %c0_i32_0 = arith.constant 0 : i32
    %c0_i32_1 = arith.constant 0 : i32
    return %c0_i32, %c0_i32_0 : i32, i32
  }
  func.func @transform_5(%arg0: i32, %arg1: i32) -> (i32, i32, i32) {
    %c0_i32 = arith.constant 0 : i32
    %c0_i32_0 = arith.constant 0 : i32
    return %arg0, %c0_i32, %arg1 : i32, i32, i32
  }
}

</mosaic_0001>

<llo_original>
// kernel: tpu_custom_call.1
$region0: #{tpu_custom_call.1}
  #allocation0 [shape = 'u32[]', space=smem, size = 0x4, offset = 0x4, fixed_abs, tag = 'smem constant byte address 0x4 - core index']
  #allocation1 [shape = 'u32[72,128]{1,0:T(1,128)}', space=vmem, size = 0x9000, scoped, tag = 'internal scratch']
  %s0 = inlined_call_operand.vmem [shape: f32[4,2], index: 0, kind: input, shape index: {}]
  %s1 = inlined_call_operand.hbm [shape: f32[2,4,256], index: 1, kind: input, shape index: {}]
  %s2 = inlined_call_operand.vmem [shape: f32[4,4], index: 2, kind: input, shape index: {}]
  %s3 = inlined_call_operand.vmem [shape: f32[4,1], index: 3, kind: input, shape index: {}]
  %s4 = inlined_call_operand.vmem [shape: f32[4,1], index: 4, kind: input, shape index: {}]
  %s5 = inlined_call_operand.hbm [shape: f32[2,4,256], index: 5, kind: output, shape index: {}]
  %s6 = sld [smem:[#allocation0]]
  $region61: #{tpu_custom_call.1} parent=0
    _
  %s8 = ssub.s32 1, %s6
  %s9 = scalar_select 0, %s8, %s6
  $region1: #{tpu_custom_call.1} parent=0
    #allocation2 [shape = 'u8[2048]{0}', space=smem, size = 0x800, scoped, tag = 'input window, operand 0, single buffered']
    #allocation3 [shape = 's32[2]{0}', space=sflag, size = 0x8, scoped, tag = 'scoped memory for tpu_custom_call.1']
    #allocation4 [shape = 's32[2]{0}', space=sflag, size = 0x8, scoped, tag = 'scoped memory for tpu_custom_call.1']
    #allocation5 [shape = 's32[2]{0}', space=sflag, size = 0x8, scoped, tag = 'scoped memory for tpu_custom_call.1']
    #allocation6 [shape = 'u8[8192]{0}', space=vmem, size = 0x2000, scoped, tag = 'input window, operand 1']
    #allocation7 [shape = 'u8[8192]{0}', space=vmem, size = 0x2000, scoped, tag = 'output window, operand 0']
    %10 = vsyncpa [#allocation5], 0
    %11 = vsyncpa [#allocation3], 0
    %s12 = scalar_lea.sflag [#allocation3], 1
    %13 = vsyncpa %s12, 0
    %14 = vsyncpa [#allocation4], 0
    %s15 = scalar_lea.sflag [#allocation4], 1
    %16 = vsyncpa %s15, 0
    loop: start=0, step=1, limit=4
    $region2: #{tpu_custom_call.1} parent=1 // loop_pre_header
      _
    $region3: #{tpu_custom_call.1} parent=1 // loop_header
      %s18 = sphi 0, %s22
      %p19 = scmp.ge.s32.totalorder %s18, 4
      %s25 = sphi 0, %s37
      %s26 = sphi 0, %s33
      %s27 = sphi 0, %s25
      %s28 = sphi 0, %s26
      %s29 = sphi 0, %s27
      %s30 = sphi 0, %s28
      %s38 = sphi 0, %s38
      %s40 = sphi 0, %s38
      %s41 = sphi 0, %s40
      %s55 = sphi 0, %s41
      %s63 = sphi 0, %s65
      %s66 = sphi 0, %s63
      %s67 = sphi 0, %s66
      %s83 = sphi 0, %s67
      %s87 = sphi 0, %s87
      %s89 = sphi 0, %s87
      %s90 = sphi 0, %s89
      %s104 = sphi 0, %s90
      %s108 = sphi 0, %s108
      %s110 = sphi 0, %s108
      %s111 = sphi 0, %s110
      %s125 = sphi 0, %s111
      %s129 = sphi 0, %s129
      %s131 = sphi 0, %s129
      %s132 = sphi 0, %s131
      %s146 = sphi 0, %s132
      %s154 = sphi 0, %s156
      %s157 = sphi 0, %s154
      %s158 = sphi 0, %s157
      %s174 = sphi 0, %s158
    $region4: #{tpu_custom_call.1} parent=1 // loop_header_branch
      %21 = sbr.rel (%p19) target = $region8
    $region5: #{tpu_custom_call.1} parent=1 // loop_body
      %s23 = ssub.s32 %s18, 1
      %s24 = ssub.s32 %s18, 2
      %s31 = sadd.s32 1, %s26
      %p32 = scmp.ge.s32.totalorder %s31, 1
      %s33 = scalar_select %p32, 0, %s31
      %s34 = sadd.s32 1, %s25
      %s35 = scalar_select %p32, %s34, %s25
      %p36 = scmp.ge.s32.totalorder %s35, 2
      %s37 = scalar_select %p36, 0, %s35
      %s39 = sadd.s32 %s38, 1
      %p42 = scmp.eq.s32.totalorder %s18, 1
      %p43 = scmp.ne.s32.totalorder %s38, %s40
      %p44 = scmp.eq.s32.totalorder %s18, 0
      %p45 = por %p43, %p44
      %p46 = scmp.ne.s32.totalorder %s38, %s40
      %p47 = scmp.eq.s32.totalorder %s23, 1
      %p48 = por %p46, %p47
      %p49 = scmp.ne.s32.totalorder %s40, %s41
      %p50 = scmp.eq.s32.totalorder %s23, 0
      %p51 = por %p49, %p50
      %p52 = scmp.ne.s32.totalorder %s40, %s41
      %p53 = scmp.eq.s32.totalorder %s24, 1
      %p54 = por %p52, %p53
      %p56 = scmp.ne.s32.totalorder %s41, %s55
      %p57 = scmp.eq.s32.totalorder %s24, 0
      %p58 = por %p56, %p57
      %s59 = ssub.s32 %s25, %s37
      %s60 = ssub.s32 %s26, %s33
      %s61 = sor.u32 %s59, %s60
      %p62 = scmp.eq.s32.totalorder %s61, 0
      %s64 = sadd.s32 %s63, 1
      %s65 = scalar_select %p62, %s63, %s64
      %p68 = pneg %p62
      %p69 = scmp.eq.s32.totalorder %s18, 1
      %p70 = por %p68, %p69
      %p71 = scmp.ne.s32.totalorder %s63, %s66
      %p72 = scmp.eq.s32.totalorder %s18, 0
      %p73 = por %p71, %p72
      %p74 = scmp.ne.s32.totalorder %s63, %s66
      %p75 = scmp.eq.s32.totalorder %s23, 1
      %p76 = por %p74, %p75
      %p77 = scmp.ne.s32.totalorder %s66, %s67
      %p78 = scmp.eq.s32.totalorder %s23, 0
      %p79 = por %p77, %p78
      %p80 = scmp.ne.s32.totalorder %s66, %s67
      %p81 = scmp.eq.s32.totalorder %s24, 1
      %p82 = por %p80, %p81
      %p84 = scmp.ne.s32.totalorder %s67, %s83
      %p85 = scmp.eq.s32.totalorder %s24, 0
      %p86 = por %p84, %p85
      %s88 = sadd.s32 %s87, 1
      %p91 = scmp.eq.s32.totalorder %s18, 1
      %p92 = scmp.ne.s32.totalorder %s87, %s89
      %p93 = scmp.eq.s32.totalorder %s18, 0
      %p94 = por %p92, %p93
      %p95 = scmp.ne.s32.totalorder %s87, %s89
      %p96 = scmp.eq.s32.totalorder %s23, 1
      %p97 = por %p95, %p96
      %p98 = scmp.ne.s32.totalorder %s89, %s90
      %p99 = scmp.eq.s32.totalorder %s23, 0
      %p100 = por %p98, %p99
      %p101 = scmp.ne.s32.totalorder %s89, %s90
      %p102 = scmp.eq.s32.totalorder %s24, 1
      %p103 = por %p101, %p102
      %p105 = scmp.ne.s32.totalorder %s90, %s104
      %p106 = scmp.eq.s32.totalorder %s24, 0
      %p107 = por %p105, %p106
      %s109 = sadd.s32 %s108, 1
      %p112 = scmp.eq.s32.totalorder %s18, 1
      %p113 = scmp.ne.s32.totalorder %s108, %s110
      %p114 = scmp.eq.s32.totalorder %s18, 0
      %p115 = por %p113, %p114
      %p116 = scmp.ne.s32.totalorder %s108, %s110
      %p117 = scmp.eq.s32.totalorder %s23, 1
      %p118 = por %p116, %p117
      %p119 = scmp.ne.s32.totalorder %s110, %s111
      %p120 = scmp.eq.s32.totalorder %s23, 0
      %p121 = por %p119, %p120
      %p122 = scmp.ne.s32.totalorder %s110, %s111
      %p123 = scmp.eq.s32.totalorder %s24, 1
      %p124 = por %p122, %p123
      %p126 = scmp.ne.s32.totalorder %s111, %s125
      %p127 = scmp.eq.s32.totalorder %s24, 0
      %p128 = por %p126, %p127
      %s130 = sadd.s32 %s129, 1
      %p133 = scmp.eq.s32.totalorder %s18, 1
      %p134 = scmp.ne.s32.totalorder %s129, %s131
      %p135 = scmp.eq.s32.totalorder %s18, 0
      %p136 = por %p134, %p135
      %p137 = scmp.ne.s32.totalorder %s129, %s131
      %p138 = scmp.eq.s32.totalorder %s23, 1
      %p139 = por %p137, %p138
      %p140 = scmp.ne.s32.totalorder %s131, %s132
      %p141 = scmp.eq.s32.totalorder %s23, 0
      %p142 = por %p140, %p141
      %p143 = scmp.ne.s32.totalorder %s131, %s132
      %p144 = scmp.eq.s32.totalorder %s24, 1
      %p145 = por %p143, %p144
      %p147 = scmp.ne.s32.totalorder %s132, %s146
      %p148 = scmp.eq.s32.totalorder %s24, 0
      %p149 = por %p147, %p148
      %s150 = ssub.s32 %s25, %s37
      %s151 = ssub.s32 %s26, %s33
      %s152 = sor.u32 %s150, %s151
      %p153 = scmp.eq.s32.totalorder %s152, 0
      %s155 = sadd.s32 %s154, 1
      %s156 = scalar_select %p153, %s154, %s155
      %p159 = pneg %p153
      %p160 = scmp.eq.s32.totalorder %s18, 1
      %p161 = por %p159, %p160
      %p162 = scmp.ne.s32.totalorder %s154, %s157
      %p163 = scmp.eq.s32.totalorder %s18, 0
      %p164 = por %p162, %p163
      %p165 = scmp.ne.s32.totalorder %s154, %s157
      %p166 = scmp.eq.s32.totalorder %s23, 1
      %p167 = por %p165, %p166
      %p168 = scmp.ne.s32.totalorder %s157, %s158
      %p169 = scmp.eq.s32.totalorder %s23, 0
      %p170 = por %p168, %p169
      %p171 = scmp.ne.s32.totalorder %s157, %s158
      %p172 = scmp.eq.s32.totalorder %s24, 1
      %p173 = por %p171, %p172
      %p175 = scmp.ne.s32.totalorder %s158, %s174
      %p176 = scmp.eq.s32.totalorder %s24, 0
      %p177 = por %p175, %p176
      %p178 = scmp.le.s32.totalorder 1, %s18
      %p179 = scmp.lt.s32.totalorder %s18, 3
      %p180 = pnand %p178, %p179
      %p181 = pneg %p180
      // Predicated region
      $region9: #{tpu_custom_call.1} parent=5 // pred_check
        _
      $region10: #{tpu_custom_call.1} parent=5 // pred_check_branch
        %183 = sbr.rel (%p180) target = $region12
      $region11: #{tpu_custom_call.1} parent=5 // pred_region
        %s184 = ssub.s32 %s18, 1
        // Predicated region
        $region13: #{tpu_custom_call.1} parent=11 // pred_check
          %p185 = pneg %p51
        $region14: #{tpu_custom_call.1} parent=11 // pred_check_branch
          %187 = sbr.rel (%p185) target = $region16
        $region15: #{tpu_custom_call.1} parent=11 // pred_region
          %189 = vsyncadd [#allocation5], 0
          %s191 = sshll.u32 %s0, 4
          %s192 = int_to_ptr.vmem [resolvable:$true] %s191
          %194 = dma.vmem_to_smem %s192, 64, [#allocation2], [#allocation5]
        $region16: #{tpu_custom_call.1} parent=11 // pred_fallthru
          _
        // Predicated region
        $region17: #{tpu_custom_call.1} parent=11 // pred_check
          %p195 = pneg %p100
        $region18: #{tpu_custom_call.1} parent=11 // pred_check_branch
          %197 = sbr.rel (%p195) target = $region20
        $region19: #{tpu_custom_call.1} parent=11 // pred_region
          _
        $region20: #{tpu_custom_call.1} parent=11 // pred_fallthru
          _
        // Predicated region
        $region21: #{tpu_custom_call.1} parent=11 // pred_check
          %p198 = pneg %p121
        $region22: #{tpu_custom_call.1} parent=11 // pred_check_branch
          %200 = sbr.rel (%p198) target = $region24
        $region23: #{tpu_custom_call.1} parent=11 // pred_region
          _
        $region24: #{tpu_custom_call.1} parent=11 // pred_fallthru
          _
        // Predicated region
        $region25: #{tpu_custom_call.1} parent=11 // pred_check
          %p201 = pneg %p142
        $region26: #{tpu_custom_call.1} parent=11 // pred_check_branch
          %203 = sbr.rel (%p201) target = $region28
        $region27: #{tpu_custom_call.1} parent=11 // pred_region
          _
        $region28: #{tpu_custom_call.1} parent=11 // pred_fallthru
          _
      $region12: #{tpu_custom_call.1} parent=5 // pred_fallthru
        _
      %p204 = scmp.lt.s32.totalorder %s18, 2
      // Predicated region
      $region29: #{tpu_custom_call.1} parent=5 // pred_check
        %p205 = pneg %p204
      $region30: #{tpu_custom_call.1} parent=5 // pred_check_branch
        %207 = sbr.rel (%p205) target = $region32
      $region31: #{tpu_custom_call.1} parent=5 // pred_region
        // Predicated region
        $region33: #{tpu_custom_call.1} parent=31 // pred_check
          %p208 = pneg %p73
        $region34: #{tpu_custom_call.1} parent=31 // pred_check_branch
          %210 = sbr.rel (%p208) target = $region36
        $region35: #{tpu_custom_call.1} parent=31 // pred_region
          %s211 = sand.u32 %s63, 1
          %s212 = scalar_lea.sflag [#allocation3], %s211
          %s213 = sand.u32 %s63, 1
          %s214 = smul.addr %s213, 8
          %s215 = scalar_lea.vmem [#allocation6], %s214
          %s216 = smul.u32 2, %s26
          %218 = vsyncadd %s212, 0
          %s219 = smul.addr %s25, 2
          %s220 = sadd.s32 %s216, %s219
          %s221 = smul.addr %s220, 4
          %s222 = scalar_lea.hbm %s1, %s221
          %s224 = sshll.u32 %s222, 4
          %s225 = int_to_ptr.hbm [resolvable:$true] %s224
          %s226 = sshll.u32 %s215, 4
          %s227 = int_to_ptr.vmem [resolvable:$true] %s226
          %229 = dma.hbm_to_vmem [thread:$0]  %s225, 128, %s227, %s212
        $region36: #{tpu_custom_call.1} parent=31 // pred_fallthru
          _
      $region32: #{tpu_custom_call.1} parent=5 // pred_fallthru
        _
      %p230 = scmp.le.s32.totalorder 1, %s18
      %p231 = scmp.lt.s32.totalorder %s18, 3
      %p232 = pnand %p230, %p231
      %p233 = pneg %p232
      // Predicated region
      $region37: #{tpu_custom_call.1} parent=5 // pred_check
        _
      $region38: #{tpu_custom_call.1} parent=5 // pred_check_branch
        %235 = sbr.rel (%p232) target = $region40
      $region39: #{tpu_custom_call.1} parent=5 // pred_region
        %s236 = ssub.s32 %s18, 1
        // Predicated region
        $region41: #{tpu_custom_call.1} parent=39 // pred_check
          %p237 = pneg %p51
        $region42: #{tpu_custom_call.1} parent=39 // pred_check_branch
          %239 = sbr.rel (%p237) target = $region44
        $region43: #{tpu_custom_call.1} parent=39 // pred_region
          %241 = dma.done [#allocation5], 64
        $region44: #{tpu_custom_call.1} parent=39 // pred_fallthru
          _
        %s242 = sand.u32 %s66, 1
        %s243 = scalar_lea.sflag [#allocation3], %s242
        %s244 = sand.u32 %s66, 1
        %s245 = smul.addr %s244, 8
        %s246 = scalar_lea.vmem [#allocation6], %s245
        // Predicated region
        $region45: #{tpu_custom_call.1} parent=39 // pred_check
          %p247 = pneg %p79
        $region46: #{tpu_custom_call.1} parent=39 // pred_check_branch
          %249 = sbr.rel (%p247) target = $region48
        $region47: #{tpu_custom_call.1} parent=39 // pred_region
          %251 = dma.done %s243, 128
        $region48: #{tpu_custom_call.1} parent=39 // pred_fallthru
          _
        %252 = sfence
        %p253 = pneg %p51
        %p254 = pneg %p48
        %s255 = sand.u32 %s66, 1
        %s256 = scalar_lea.sflag [#allocation3], %s255
        %s257 = sand.u32 %s66, 1
        %s258 = smul.addr %s257, 8
        %s259 = scalar_lea.vmem [#allocation6], %s258
        %p260 = pneg %p79
        %p261 = pneg %p76
        %p262 = pneg %p100
        %p263 = pneg %p97
        %p264 = pneg %p121
        %p265 = pneg %p118
        %p266 = pneg %p142
        %p267 = pneg %p139
        %p268 = pneg %p170
        %p269 = pneg %p167
        %s270 = sand.u32 %s157, 1
        %s271 = scalar_lea.sflag [#allocation4], %s270
        %s272 = sand.u32 %s157, 1
        %s273 = smul.addr %s272, 8
        %s274 = scalar_lea.vmem [#allocation7], %s273
        %s275 = smul.u32 2, %s28
        %s276 = smul.u32 2, %s28
        %s277 = sld [smem:[#allocation2 + %s27]]
        %s278 = sshra.s32 %s27, 7
        %s279 = sand.u32 %s27, 127
        %s280 = sadd.s32 %s278, 1
        %s281 = smul.u32 %s280, 128
        %s282 = sshra.s32 %s27, 7
        %s283 = sand.u32 %s27, 127
        %s284 = sadd.s32 %s281, %s283
        %s285 = sld [smem:[#allocation2 + %s284]]
        %s286 = sadd.s32 %s278, 2
        %s287 = smul.u32 %s286, 128
        %s288 = sadd.s32 %s287, %s283
        %s289 = sld [smem:[#allocation2 + %s288]]
        %s290 = sadd.s32 %s278, 3
        %s291 = smul.u32 %s290, 128
        %s292 = sadd.s32 %s291, %s283
        %s293 = sld [smem:[#allocation2 + %s292]]
        %v294 = vld [vmem:[%s246] sm:$0xff]
        %v295 = vstv %s277
        %v296 = vmul.f32 %v294, %v295
        %v297 = vld [vmem:[%s2] sm:$0xf]
        %299 = vset.pattern.permute.xlu0 0
        %300 = vperm.xlu0 %299, %v297
        %v301 = vpop.permute.xlu0 %300
        %v304 = vperm.slane %v296, 0
        %v305 = vperm.slane %v296, 4
        %v308 = vperm.slane %v304, 0
        %v309 = vperm.slane %v305, 0
        %v310 = vmul.f32 %v301, %v308
        %v311 = vmul.f32 %v301, %v309
        %312 = vset.pattern.permute.xlu0 1
        %313 = vperm.xlu0 %312, %v297
        %v314 = vpop.permute.xlu0 %313
        %v316 = vperm.slane %v296, 1
        %v317 = vperm.slane %v296, 5
        %v320 = vperm.slane %v316, 1
        %v321 = vperm.slane %v317, 1
        %v322 = vmul.f32 %v314, %v320
        %v323 = vmul.f32 %v314, %v321
        %v324 = vadd.f32 %v310, %v322
        %v325 = vadd.f32 %v311, %v323
        %326 = vset.pattern.permute.xlu0 2
        %327 = vperm.xlu0 %326, %v297
        %v328 = vpop.permute.xlu0 %327
        %v330 = vperm.slane %v296, 2
        %v331 = vperm.slane %v296, 6
        %v334 = vperm.slane %v330, 2
        %v335 = vperm.slane %v331, 2
        %v336 = vmul.f32 %v328, %v334
        %v337 = vmul.f32 %v328, %v335
        %v338 = vadd.f32 %v324, %v336
        %v339 = vadd.f32 %v325, %v337
        %340 = vset.pattern.permute.xlu0 3
        %341 = vperm.xlu0 %340, %v297
        %v342 = vpop.permute.xlu0 %341
        %v344 = vperm.slane %v296, 3
        %v345 = vperm.slane %v296, 7
        %v348 = vperm.slane %v344, 3
        %v349 = vperm.slane %v345, 3
        %v350 = vmul.f32 %v342, %v348
        %v351 = vmul.f32 %v342, %v349
        %v352 = vadd.f32 %v338, %v350
        %v353 = vadd.f32 %v339, %v351
        %v354 = vld [vmem:[%s3] sm:$0xf]
        %v355 = vld [vmem:[%s4] sm:$0xf]
        %v356 = vstv %s293
        %v357 = vmul.f32 %v355, %v356
        %v358 = vadd.f32 %v354, %v357
        %360 = vset.pattern.permute.xlu0 0
        %361 = vperm.xlu0 %360, %v358
        %v362 = vpop.permute.xlu0 %361
        %v364 = vadd.f32 %v352, %v362
        %v365 = vadd.f32 %v353, %v362
        %v366 = vstv %s285
        %v367 = vmul.f32 %v366, %v294
        %v368 = vstv %s289
        %v369 = vmul.f32 %v368, %v364
        %v370 = vmul.f32 %v368, %v365
        %v373 = vrot.slane %v370, 4
        %vm374 = vcmask 1043456
        %v375 = vsel %vm374, %v369, %v373
        %v377 = vadd.f32 %v367, %v375
        %378 = vst [vmem:[%s274] sm:$0xff] %v377
        %s379 = sand.u32 %s157, 1
        %s380 = scalar_lea.sflag [#allocation4], %s379
        %s381 = sand.u32 %s157, 1
        %s382 = smul.addr %s381, 8
        %s383 = scalar_lea.vmem [#allocation7], %s382
        // Predicated region
        $region49: #{tpu_custom_call.1} parent=39 // pred_check
          %p384 = pneg %p167
        $region50: #{tpu_custom_call.1} parent=39 // pred_check_branch
          %386 = sbr.rel (%p384) target = $region52
        $region51: #{tpu_custom_call.1} parent=39 // pred_region
          %s387 = smul.u32 2, %s28
          %389 = vsyncadd %s380, 0
          %s390 = smul.addr %s27, 2
          %s391 = sadd.s32 %s387, %s390
          %s392 = smul.addr %s391, 4
          %s393 = scalar_lea.hbm %s5, %s392
          %s395 = sshll.u32 %s383, 4
          %s396 = int_to_ptr.vmem [resolvable:$true] %s395
          %s397 = sshll.u32 %s393, 4
          %s398 = int_to_ptr.hbm [resolvable:$true] %s397
          %400 = dma.vmem_to_hbm [thread:$0]  %s396, 128, %s398, %s380
        $region52: #{tpu_custom_call.1} parent=39 // pred_fallthru
          _
      $region40: #{tpu_custom_call.1} parent=5 // pred_fallthru
        _
      %p401 = scmp.le.s32.totalorder 2, %s18
      // Predicated region
      $region53: #{tpu_custom_call.1} parent=5 // pred_check
        %p402 = pneg %p401
      $region54: #{tpu_custom_call.1} parent=5 // pred_check_branch
        %404 = sbr.rel (%p402) target = $region56
      $region55: #{tpu_custom_call.1} parent=5 // pred_region
        %s405 = ssub.s32 %s18, 2
        // Predicated region
        $region57: #{tpu_custom_call.1} parent=55 // pred_check
          %p406 = pneg %p173
        $region58: #{tpu_custom_call.1} parent=55 // pred_check_branch
          %408 = sbr.rel (%p406) target = $region60
        $region59: #{tpu_custom_call.1} parent=55 // pred_region
          %s409 = sand.u32 %s158, 1
          %s410 = scalar_lea.sflag [#allocation4], %s409
          %s411 = sand.u32 %s158, 1
          %s412 = smul.addr %s411, 8
          %s413 = scalar_lea.vmem [#allocation7], %s412
          %415 = dma.done %s410, 128
        $region60: #{tpu_custom_call.1} parent=55 // pred_fallthru
          _
      $region56: #{tpu_custom_call.1} parent=5 // pred_fallthru
        _
    $region6: #{tpu_custom_call.1} parent=1 // loop_footer
      %s22 = sadd.s32 1, %s18
    $region7: #{tpu_custom_call.1} parent=1 // loop_footer_branch
      %17 = sbr.rel target = $region3
    $region8: #{tpu_custom_call.1} parent=1 // loop_exit
      _
    %416 = vsyncpa [#allocation3], 1
    %s417 = scalar_lea.sflag [#allocation3], 1
    %418 = vsyncpa %s417, 1
    %419 = vsyncpa [#allocation4], 1
    %s420 = scalar_lea.sflag [#allocation4], 1
    %421 = vsyncpa %s420, 1
    %422 = vsyncpa [#allocation5], 1
    %s423 = scalar_lea.sflag [#allocation5], 1
    %424 = vsyncpa %s423, 1

</llo_original>
